<compile_context>
chip_gen: v7x
topology: tpu7x:2x2x1
jax: 0.10.0
libtpu: 0.0.40
codegen_flags: <defaults>
</compile_context>

<pallas_src>
import functools

import jax
import jax.numpy as jnp
from jax.experimental import pallas as pl
from jax.experimental.pallas import tpu as pltpu


def channel_attention_kernel(x_ref, w1t_ref, w2t_ref, o_ref, sum_acc, max_acc,
                             *, s_valid, tile_s, inv_s, needs_mask):
    # x_ref: (1, C, TILE_S) native dtype   w1t_ref: (C, Cr) f32   w2t_ref: (Cr, C) f32
    # o_ref: (1, 1, C) f32                 sum_acc / max_acc: (1, C) f32 scratch
    k = pl.program_id(1)
    last = pl.num_programs(1) - 1

    @pl.when(k == 0)
    def _init():
        sum_acc[...] = jnp.zeros_like(sum_acc)
        max_acc[...] = jnp.full_like(max_acc, -jnp.inf)

    def accumulate(x_sum, x_max):
        # Streamed reductions: raw sum (divide deferred to epilogue) + running max.
        sum_acc[...] += jnp.sum(x_sum, axis=-1)
        max_acc[...] = jnp.maximum(max_acc[...], jnp.max(x_max, axis=-1))

    if not needs_mask:
        # TILE_S divides S (or single full-extent tile): no masking anywhere.
        x = x_ref[...].astype(jnp.float32)
        accumulate(x, x)
    else:
        # Steady-state tiles: pure load + add + max (no iota / compare / select).
        @pl.when(k < last)
        def _steady():
            x = x_ref[...].astype(jnp.float32)
            accumulate(x, x)

        # Final partial tile: OOB lanes of the block are undefined, so mask them —
        # 0 for the sum path, -inf for the max path. Lane-only iota, broadcast over C.
        @pl.when(k == last)
        def _tail():
            x = x_ref[...].astype(jnp.float32)
            lane = jax.lax.broadcasted_iota(jnp.int32, (1, 1, tile_s), 2)
            valid = (k * tile_s + lane) < s_valid
            accumulate(jnp.where(valid, x, 0.0), jnp.where(valid, x, -jnp.inf))

    @pl.when(k == last)
    def _epilogue():
        avg = sum_acc[...] * inv_s                        # AdaptiveAvgPool3d -> (1, C)
        mx = max_acc[...]                                 # AdaptiveMaxPool3d -> (1, C)
        # Fused avg/max branches: one (2, C) @ (C, Cr) chain instead of two.
        p = jnp.concatenate([avg, mx], axis=0)            # (2, C)
        h = jnp.dot(p, w1t_ref[...], preferred_element_type=jnp.float32)   # (2, Cr)
        h = jnp.where(h >= 0.0, h, 0.1 * h)               # LeakyReLU(0.1)
        y = jnp.dot(h, w2t_ref[...], preferred_element_type=jnp.float32)   # (2, C)
        out = y[0:1, :] + y[1:2, :]                       # (1, C)
        o_ref[0] = jax.nn.sigmoid(out).astype(o_ref.dtype)


def channel_attention(x, w1, w2, *, tile_s=None):
    """x: (N, C, D, H, W); w1: (Cr, C); w2: (C, Cr). Returns (N, C, 1, 1, 1) in x.dtype."""
    N, C, D, H, W = x.shape
    Cr = w1.shape[0]
    S = D * H * W
    itemsize = jnp.dtype(x.dtype).itemsize
    # Native dtype, no pad, no upcast: zero extra HBM passes before the kernel.
    x3 = x.reshape(N, C, S)

    # Lane-dense spatial tile: multiple of 128, ~4 MiB per buffer (HBM-roofline plateau),
    # capped at 32768 lanes. Double-buffered x + resident weights stays within every
    # generation's VMEM; scoped limit is set explicitly below.
    if tile_s is None:
        budget_bytes = 4 * 1024 * 1024
        cap = max(128, min(32768, (budget_bytes // (C * itemsize)) // 128 * 128))
        tile_s = S if S <= cap else cap
    elif tile_s < S:
        tile_s = max(128, (tile_s // 128) * 128)   # keep the (8,128) block constraint
    else:
        tile_s = S
    num_s = pl.cdiv(S, tile_s)
    needs_mask = (num_s * tile_s != S)             # last block is partial -> mask in-kernel

    kernel = functools.partial(
        channel_attention_kernel,
        s_valid=S, tile_s=tile_s, inv_s=1.0 / float(S), needs_mask=needs_mask)

    cost = pl.CostEstimate(
        flops=2 * N * C * S + 4 * N * C * Cr,
        transcendentals=N * C,
        bytes_accessed=N * C * S * itemsize + 2 * C * Cr * 4 + N * C * 4)

    out = pl.pallas_call(
        kernel,
        out_shape=jax.ShapeDtypeStruct((N, 1, C), jnp.float32),
        grid_spec=pltpu.PrefetchScalarGridSpec(
            num_scalar_prefetch=0,
            grid=(N, num_s),
            in_specs=[
                # x streams through VMEM, one (1, C, TILE_S) tile per step (double-buffered).
                pl.BlockSpec((1, C, tile_s), lambda n, k: (n, 0, k)),
                # Weights: full, grid-invariant blocks -> DMA'd once, stay resident.
                pl.BlockSpec((C, Cr), lambda n, k: (0, 0)),
                pl.BlockSpec((Cr, C), lambda n, k: (0, 0)),
            ],
            out_specs=pl.BlockSpec((1, 1, C), lambda n, k: (n, 0, 0)),
            scratch_shapes=[
                pltpu.VMEM((1, C), jnp.float32),   # running sum
                pltpu.VMEM((1, C), jnp.float32),   # running max
            ],
        ),
        compiler_params=pltpu.CompilerParams(
            dimension_semantics=("parallel", "arbitrary"),
            vmem_limit_bytes=32 * 1024 * 1024),
        cost_estimate=cost,
    )(x3, w1.T.astype(jnp.float32), w2.T.astype(jnp.float32))

    return out.astype(x.dtype).reshape(N, C, 1, 1, 1)


def channel_attention_ref(x, w1, w2):
    # Pure-JAX reference matching the PyTorch forward semantics (1x1x1 convs, no bias,
    # LeakyReLU(0.1) as in the source module).
    xf = x.astype(jnp.float32)
    avg = jnp.mean(xf, axis=(2, 3, 4))
    mx = jnp.max(xf, axis=(2, 3, 4))

    def fc(p):
        h = p @ w1.T.astype(jnp.float32)
        h = jnp.where(h >= 0.0, h, 0.1 * h)
        return h @ w2.T.astype(jnp.float32)

    out = jax.nn.sigmoid(fc(avg) + fc(mx))
    return out[:, :, None, None, None].astype(x.dtype)


if __name__ == "__main__":
    # Small shapes consistent with the module: in_channel=32, ratio=16 -> hidden=2.
    N, C, ratio = 2, 32, 16
    Cr = C // ratio
    D, H, W = 5, 6, 7          # S = 210 -> exercises the partial / masked tail path

    key = jax.random.PRNGKey(0)
    kx, k1, k2 = jax.random.split(key, 3)

    x = jax.random.normal(kx, (N, C, D, H, W), dtype=jnp.float32)
    # Conv3d kernels are 1x1x1 and bias-free -> plain matrices.
    w1 = jax.random.normal(k1, (Cr, C), dtype=jnp.float32) * (1.0 / jnp.sqrt(C))
    w2 = jax.random.normal(k2, (C, Cr), dtype=jnp.float32) * (1.0 / jnp.sqrt(Cr))

    ref = channel_attention_ref(x, w1, w2)

    # 1) default tiling: single full-extent spatial tile (210 lanes), no pad, no mask.
    out = jax.block_until_ready(channel_attention(x, w1, w2))
    assert out.shape == (N, C, 1, 1, 1), out.shape
    assert jnp.allclose(out, ref, rtol=1e-5, atol=1e-5), (
        f"max abs err = {jnp.max(jnp.abs(out - ref))}")

    # 2) forced 128-lane tiles: multiple S grid steps, streamed accumulators, and an
    #    in-kernel-masked partial last tile (replaces the old wrapper-side pad).
    out2 = jax.block_until_ready(channel_attention(x, w1, w2, tile_s=128))
    assert jnp.allclose(out2, ref, rtol=1e-5, atol=1e-5), (
        f"max abs err (tiled) = {jnp.max(jnp.abs(out2 - ref))}")

    # 3) native bf16 streaming (no wrapper upcast); reference computed on the same
    #    bf16-rounded values, so only summation-order noise remains.
    xb = x.astype(jnp.bfloat16)
    refb = channel_attention_ref(xb, w1, w2)
    out3 = jax.block_until_ready(channel_attention(xb, w1, w2, tile_s=128))
    assert out3.dtype == jnp.bfloat16, out3.dtype
    assert jnp.allclose(out3.astype(jnp.float32), refb.astype(jnp.float32),
                        rtol=2e-2, atol=2e-2), (
        f"max abs err (bf16) = {jnp.max(jnp.abs(out3.astype(jnp.float32) - refb.astype(jnp.float32)))}")

    print("KERNEL_OK")
</pallas_src>

<mosaic_0001>
module attributes {stable_mosaic.version = 11 : i64} {
  func.func @channel_attention_kernel(%arg0: i32, %arg1: i32, %arg2: memref<1x32x210xf32, #tpu.memory_space<vmem>>, %arg3: memref<32x2xf32, #tpu.memory_space<vmem>>, %arg4: memref<2x32xf32, #tpu.memory_space<vmem>>, %arg5: memref<1x1x32xf32, #tpu.memory_space<vmem>>, %arg6: memref<1x32xf32, #tpu.memory_space<vmem>>, %arg7: memref<1x32xf32, #tpu.memory_space<vmem>>) attributes {dimension_semantics = [#tpu.dimension_semantics<parallel>, #tpu.dimension_semantics<arbitrary>], iteration_bounds = array<i64: 2, 1>, scalar_prefetch = 0 : i64, scratch_operands = 2 : i64, tpu.core_type = #tpu.core_type<tc>, window_params = [{transform_indices = @transform_0, window_bounds = array<i64: 1, 32, 210>}, {pipeline_mode = #tpu.pipeline_mode<synchronous>, transform_indices = @transform_1, window_bounds = array<i64: 32, 2>}, {pipeline_mode = #tpu.pipeline_mode<synchronous>, transform_indices = @transform_2, window_bounds = array<i64: 2, 32>}, {transform_indices = @transform_3, window_bounds = array<i64: 1, 1, 32>}]} {
    %c0_i32 = arith.constant 0 : i32
    %0 = arith.cmpi eq, %arg1, %c0_i32 : i32
    %1 = arith.extui %0 : i1 to i32
    %c0_i32_0 = arith.constant 0 : i32
    %2 = arith.cmpi ne, %1, %c0_i32_0 : i32
    scf.if %2 {
      %cst_14 = arith.constant 0.000000e+00 : f32
      %15 = vector.broadcast %cst_14 : f32 to vector<1x32xf32>
      %c0_15 = arith.constant 0 : index
      %c0_16 = arith.constant 0 : index
      %16 = vector.load %arg6[%c0_15, %c0_16] : memref<1x32xf32, #tpu.memory_space<vmem>>, vector<1x32xf32>
      tpu.vector_store %arg6[%c0_15, %c0_16], %15 {strides = array<i32>} : memref<1x32xf32, #tpu.memory_space<vmem>>, vector<1x32xf32>,
      %cst_17 = arith.constant 0xFF800000 : f32
      %17 = vector.broadcast %cst_17 : f32 to vector<1x32xf32>
      %c0_18 = arith.constant 0 : index
      %c0_19 = arith.constant 0 : index
      %18 = vector.load %arg7[%c0_18, %c0_19] : memref<1x32xf32, #tpu.memory_space<vmem>>, vector<1x32xf32>
      tpu.vector_store %arg7[%c0_18, %c0_19], %17 {strides = array<i32>} : memref<1x32xf32, #tpu.memory_space<vmem>>, vector<1x32xf32>,
    } else {
    }
    %c0 = arith.constant 0 : index
    %c0_1 = arith.constant 0 : index
    %c0_2 = arith.constant 0 : index
    %3 = vector.load %arg2[%c0, %c0_1, %c0_2] : memref<1x32x210xf32, #tpu.memory_space<vmem>>, vector<1x32x210xf32>
    %c0_3 = arith.constant 0 : index
    %c0_4 = arith.constant 0 : index
    %4 = vector.load %arg6[%c0_3, %c0_4] : memref<1x32xf32, #tpu.memory_space<vmem>>, vector<1x32xf32>
    %cst = arith.constant dense<0.000000e+00> : vector<1x32xf32>
    %5 = vector.multi_reduction <add>, %3, %cst [2] : vector<1x32x210xf32> to vector<1x32xf32>
    %6 = arith.addf %4, %5 : vector<1x32xf32>
    %c0_5 = arith.constant 0 : index
    %c0_6 = arith.constant 0 : index
    %7 = vector.load %arg6[%c0_5, %c0_6] : memref<1x32xf32, #tpu.memory_space<vmem>>, vector<1x32xf32>
    tpu.vector_store %arg6[%c0_5, %c0_6], %6 {strides = array<i32>} : memref<1x32xf32, #tpu.memory_space<vmem>>, vector<1x32xf32>,
    %c0_7 = arith.constant 0 : index
    %c0_8 = arith.constant 0 : index
    %8 = vector.load %arg7[%c0_7, %c0_8] : memref<1x32xf32, #tpu.memory_space<vmem>>, vector<1x32xf32>
    %cst_9 = arith.constant dense<0xFF800000> : vector<1x32xf32>
    %9 = vector.multi_reduction <maximumf>, %3, %cst_9 [2] : vector<1x32x210xf32> to vector<1x32xf32>
    %10 = arith.maximumf %8, %9 : vector<1x32xf32>
    %c0_10 = arith.constant 0 : index
    %c0_11 = arith.constant 0 : index
    %11 = vector.load %arg7[%c0_10, %c0_11] : memref<1x32xf32, #tpu.memory_space<vmem>>, vector<1x32xf32>
    tpu.vector_store %arg7[%c0_10, %c0_11], %10 {strides = array<i32>} : memref<1x32xf32, #tpu.memory_space<vmem>>, vector<1x32xf32>,
    %c0_i32_12 = arith.constant 0 : i32
    %12 = arith.cmpi eq, %arg1, %c0_i32_12 : i32
    %13 = arith.extui %12 : i1 to i32
    %c0_i32_13 = arith.constant 0 : i32
    %14 = arith.cmpi ne, %13, %c0_i32_13 : i32
    scf.if %14 {
      %c0_14 = arith.constant 0 : index
      %c0_15 = arith.constant 0 : index
      %15 = vector.load %arg6[%c0_14, %c0_15] : memref<1x32xf32, #tpu.memory_space<vmem>>, vector<1x32xf32>
      %cst_16 = arith.constant 0.00476190494 : f32
      %16 = vector.broadcast %cst_16 : f32 to vector<1x32xf32>
      %17 = arith.mulf %15, %16 : vector<1x32xf32>
      %c0_17 = arith.constant 0 : index
      %c0_18 = arith.constant 0 : index
      %18 = vector.load %arg7[%c0_17, %c0_18] : memref<1x32xf32, #tpu.memory_space<vmem>>, vector<1x32xf32>
      %19 = tpu.concatenate %17, %18 in 0 : vector<1x32xf32>, vector<1x32xf32> -> vector<2x32xf32>
      %c0_19 = arith.constant 0 : index
      %c0_20 = arith.constant 0 : index
      %20 = vector.load %arg3[%c0_19, %c0_20] : memref<32x2xf32, #tpu.memory_space<vmem>>, vector<32x2xf32>
      %cst_21 = arith.constant dense<0.000000e+00> : vector<2x2xf32>
      %21 = tpu.matmul %19, %20, %cst_21 {dimension_numbers = #tpu.dot_dimension_numbers<[1], [0], [0], [1], [0, 0, 1, 1], [], []>} : vector<2x32xf32>, vector<32x2xf32>, vector<2x2xf32> -> vector<2x2xf32>
      %cst_22 = arith.constant 0.000000e+00 : f32
      %22 = vector.broadcast %cst_22 : f32 to vector<2x2xf32>
      %23 = arith.cmpf oge, %21, %22 : vector<2x2xf32>
      %cst_23 = arith.constant 1.000000e-01 : f32
      %24 = vector.broadcast %cst_23 : f32 to vector<2x2xf32>
      %25 = arith.mulf %24, %21 : vector<2x2xf32>
      %26 = arith.select %23, %21, %25 : vector<2x2xi1>, vector<2x2xf32>
      %c0_24 = arith.constant 0 : index
      %c0_25 = arith.constant 0 : index
      %27 = vector.load %arg4[%c0_24, %c0_25] : memref<2x32xf32, #tpu.memory_space<vmem>>, vector<2x32xf32>
      %cst_26 = arith.constant dense<0.000000e+00> : vector<2x32xf32>
      %28 = tpu.matmul %26, %27, %cst_26 {dimension_numbers = #tpu.dot_dimension_numbers<[1], [0], [0], [1], [0, 0, 1, 1], [], []>} : vector<2x2xf32>, vector<2x32xf32>, vector<2x32xf32> -> vector<2x32xf32>
      %29 = vector.extract_strided_slice %28 {offsets = [0, 0], sizes = [1, 32], strides = [1, 1]} : vector<2x32xf32> to vector<1x32xf32>
      %30 = vector.extract_strided_slice %28 {offsets = [1, 0], sizes = [1, 32], strides = [1, 1]} : vector<2x32xf32> to vector<1x32xf32>
      %31 = arith.addf %29, %30 : vector<1x32xf32>
      %32 = arith.negf %31 : vector<1x32xf32>
      %33 = math.exp %32 : vector<1x32xf32>
      %cst_27 = arith.constant 1.000000e+00 : f32
      %34 = vector.broadcast %cst_27 : f32 to vector<1x32xf32>
      %35 = arith.addf %34, %33 : vector<1x32xf32>
      %36 = arith.divf %34, %35 : vector<1x32xf32>
      %c0_28 = arith.constant 0 : index
      %c0_29 = arith.constant 0 : index
      %c0_30 = arith.constant 0 : index
      %37 = vector.load %arg5[%c0_28, %c0_29, %c0_30] : memref<1x1x32xf32, #tpu.memory_space<vmem>>, vector<1x1x32xf32>
      %38 = vector.shape_cast %37 : vector<1x1x32xf32> to vector<1x32xf32>
      %39 = vector.shape_cast %36 : vector<1x32xf32> to vector<1x1x32xf32>
      tpu.vector_store %arg5[%c0_28, %c0_29, %c0_30], %39 {strides = array<i32>} : memref<1x1x32xf32, #tpu.memory_space<vmem>>, vector<1x1x32xf32>,
    } else {
    }
    return
  }
  func.func @transform_0(%arg0: i32, %arg1: i32) -> (i32, i32, i32) {
    %c0_i32 = arith.constant 0 : i32
    %c0_i32_0 = arith.constant 0 : i32
    return %arg0, %c0_i32, %arg1 : i32, i32, i32
  }
  func.func @transform_1(%arg0: i32, %arg1: i32) -> (i32, i32) {
    %c0_i32 = arith.constant 0 : i32
    %c0_i32_0 = arith.constant 0 : i32
    %c0_i32_1 = arith.constant 0 : i32
    return %c0_i32, %c0_i32_0 : i32, i32
  }
  func.func @transform_2(%arg0: i32, %arg1: i32) -> (i32, i32) {
    %c0_i32 = arith.constant 0 : i32
    %c0_i32_0 = arith.constant 0 : i32
    %c0_i32_1 = arith.constant 0 : i32
    return %c0_i32, %c0_i32_0 : i32, i32
  }
  func.func @transform_3(%arg0: i32, %arg1: i32) -> (i32, i32, i32) {
    %c0_i32 = arith.constant 0 : i32
    %c0_i32_0 = arith.constant 0 : i32
    %c0_i32_1 = arith.constant 0 : i32
    return %arg0, %c0_i32, %c0_i32_0 : i32, i32, i32
  }
}

</mosaic_0001>

<llo_original>
// kernel: tpu_custom_call.1
$region0: #{tpu_custom_call.1}
  #allocation0 [shape = 'u32[]', space=smem, size = 0x4, offset = 0x4, fixed_abs, tag = 'smem constant byte address 0x4 - core index']
  #allocation1 [shape = 'u32[144,128]{1,0:T(1,128)}', space=vmem, size = 0x12000, scoped, tag = 'internal scratch']
  #allocation2 [shape = 'f32[1,32]{1,0:T(1,128)}', space=vmem, size = 0x200, scoped, tag = 'scratch operand']
  #allocation3 [shape = 'f32[1,32]{1,0:T(1,128)}', space=vmem, size = 0x200, scoped, tag = 'scratch operand']
  %s0 = inlined_call_operand.hbm [shape: f32[2,32,210], index: 0, kind: input, shape index: {}]
  %s1 = inlined_call_operand.vmem [shape: f32[32,2], index: 1, kind: input, shape index: {}]
  %s2 = inlined_call_operand.vmem [shape: f32[2,32], index: 2, kind: input, shape index: {}]
  %s3 = inlined_call_operand.hbm [shape: f32[2,1,32], index: 3, kind: output, shape index: {}]
  %s4 = sld [smem:[#allocation0]]
  $region57: #{tpu_custom_call.1} parent=0
    _
  %s6 = ssub.s32 1, %s4
  %s7 = scalar_select 0, %s6, %s4
  $region1: #{tpu_custom_call.1} parent=0
    #allocation4 [shape = 'u8[65536]{0}', space=vmem, size = 0x10000, scoped, tag = 'input window, operand 0']
    #allocation5 [shape = 's32[2]{0}', space=sflag, size = 0x8, scoped, tag = 'scoped memory for tpu_custom_call.1']
    #allocation6 [shape = 's32[2]{0}', space=sflag, size = 0x8, scoped, tag = 'scoped memory for tpu_custom_call.1']
    #allocation7 [shape = 'u8[1024]{0}', space=vmem, size = 0x400, scoped, tag = 'output window, operand 0']
    %8 = vsyncpa [#allocation5], 0
    %s9 = scalar_lea.sflag [#allocation5], 1
    %10 = vsyncpa %s9, 0
    %11 = vsyncpa [#allocation6], 0
    %s12 = scalar_lea.sflag [#allocation6], 1
    %13 = vsyncpa %s12, 0
    loop: start=0, step=1, limit=4
    $region2: #{tpu_custom_call.1} parent=1 // loop_pre_header
      _
    $region3: #{tpu_custom_call.1} parent=1 // loop_header
      %s15 = sphi 0, %s19
      %p16 = scmp.ge.s32.totalorder %s15, 4
      %s22 = sphi 0, %s34
      %s23 = sphi 0, %s30
      %s24 = sphi 0, %s22
      %s25 = sphi 0, %s23
      %s26 = sphi 0, %s24
      %s27 = sphi 0, %s25
      %s39 = sphi 0, %s41
      %s42 = sphi 0, %s39
      %s43 = sphi 0, %s42
      %s59 = sphi 0, %s43
      %s63 = sphi 0, %s63
      %s65 = sphi 0, %s63
      %s66 = sphi 0, %s65
      %s80 = sphi 0, %s66
      %s84 = sphi 0, %s84
      %s86 = sphi 0, %s84
      %s87 = sphi 0, %s86
      %s101 = sphi 0, %s87
      %s107 = sphi 0, %s109
      %s110 = sphi 0, %s107
      %s111 = sphi 0, %s110
      %s127 = sphi 0, %s111
    $region4: #{tpu_custom_call.1} parent=1 // loop_header_branch
      %18 = sbr.rel (%p16) target = $region8
    $region5: #{tpu_custom_call.1} parent=1 // loop_body
      %s20 = ssub.s32 %s15, 1
      %s21 = ssub.s32 %s15, 2
      %s28 = sadd.s32 1, %s23
      %p29 = scmp.ge.s32.totalorder %s28, 1
      %s30 = scalar_select %p29, 0, %s28
      %s31 = sadd.s32 1, %s22
      %s32 = scalar_select %p29, %s31, %s22
      %p33 = scmp.ge.s32.totalorder %s32, 2
      %s34 = scalar_select %p33, 0, %s32
      %s35 = ssub.s32 %s22, %s34
      %s36 = ssub.s32 %s23, %s30
      %s37 = sor.u32 %s35, %s36
      %p38 = scmp.eq.s32.totalorder %s37, 0
      %s40 = sadd.s32 %s39, 1
      %s41 = scalar_select %p38, %s39, %s40
      %p44 = pneg %p38
      %p45 = scmp.eq.s32.totalorder %s15, 1
      %p46 = por %p44, %p45
      %p47 = scmp.ne.s32.totalorder %s39, %s42
      %p48 = scmp.eq.s32.totalorder %s15, 0
      %p49 = por %p47, %p48
      %p50 = scmp.ne.s32.totalorder %s39, %s42
      %p51 = scmp.eq.s32.totalorder %s20, 1
      %p52 = por %p50, %p51
      %p53 = scmp.ne.s32.totalorder %s42, %s43
      %p54 = scmp.eq.s32.totalorder %s20, 0
      %p55 = por %p53, %p54
      %p56 = scmp.ne.s32.totalorder %s42, %s43
      %p57 = scmp.eq.s32.totalorder %s21, 1
      %p58 = por %p56, %p57
      %p60 = scmp.ne.s32.totalorder %s43, %s59
      %p61 = scmp.eq.s32.totalorder %s21, 0
      %p62 = por %p60, %p61
      %s64 = sadd.s32 %s63, 1
      %p67 = scmp.eq.s32.totalorder %s15, 1
      %p68 = scmp.ne.s32.totalorder %s63, %s65
      %p69 = scmp.eq.s32.totalorder %s15, 0
      %p70 = por %p68, %p69
      %p71 = scmp.ne.s32.totalorder %s63, %s65
      %p72 = scmp.eq.s32.totalorder %s20, 1
      %p73 = por %p71, %p72
      %p74 = scmp.ne.s32.totalorder %s65, %s66
      %p75 = scmp.eq.s32.totalorder %s20, 0
      %p76 = por %p74, %p75
      %p77 = scmp.ne.s32.totalorder %s65, %s66
      %p78 = scmp.eq.s32.totalorder %s21, 1
      %p79 = por %p77, %p78
      %p81 = scmp.ne.s32.totalorder %s66, %s80
      %p82 = scmp.eq.s32.totalorder %s21, 0
      %p83 = por %p81, %p82
      %s85 = sadd.s32 %s84, 1
      %p88 = scmp.eq.s32.totalorder %s15, 1
      %p89 = scmp.ne.s32.totalorder %s84, %s86
      %p90 = scmp.eq.s32.totalorder %s15, 0
      %p91 = por %p89, %p90
      %p92 = scmp.ne.s32.totalorder %s84, %s86
      %p93 = scmp.eq.s32.totalorder %s20, 1
      %p94 = por %p92, %p93
      %p95 = scmp.ne.s32.totalorder %s86, %s87
      %p96 = scmp.eq.s32.totalorder %s20, 0
      %p97 = por %p95, %p96
      %p98 = scmp.ne.s32.totalorder %s86, %s87
      %p99 = scmp.eq.s32.totalorder %s21, 1
      %p100 = por %p98, %p99
      %p102 = scmp.ne.s32.totalorder %s87, %s101
      %p103 = scmp.eq.s32.totalorder %s21, 0
      %p104 = por %p102, %p103
      %s105 = ssub.s32 %s22, %s34
      %p106 = scmp.eq.s32.totalorder %s105, 0
      %s108 = sadd.s32 %s107, 1
      %s109 = scalar_select %p106, %s107, %s108
      %p112 = pneg %p106
      %p113 = scmp.eq.s32.totalorder %s15, 1
      %p114 = por %p112, %p113
      %p115 = scmp.ne.s32.totalorder %s107, %s110
      %p116 = scmp.eq.s32.totalorder %s15, 0
      %p117 = por %p115, %p116
      %p118 = scmp.ne.s32.totalorder %s107, %s110
      %p119 = scmp.eq.s32.totalorder %s20, 1
      %p120 = por %p118, %p119
      %p121 = scmp.ne.s32.totalorder %s110, %s111
      %p122 = scmp.eq.s32.totalorder %s20, 0
      %p123 = por %p121, %p122
      %p124 = scmp.ne.s32.totalorder %s110, %s111
      %p125 = scmp.eq.s32.totalorder %s21, 1
      %p126 = por %p124, %p125
      %p128 = scmp.ne.s32.totalorder %s111, %s127
      %p129 = scmp.eq.s32.totalorder %s21, 0
      %p130 = por %p128, %p129
      %p131 = scmp.le.s32.totalorder 1, %s15
      %p132 = scmp.lt.s32.totalorder %s15, 3
      %p133 = pnand %p131, %p132
      %p134 = pneg %p133
      // Predicated region
      $region9: #{tpu_custom_call.1} parent=5 // pred_check
        _
      $region10: #{tpu_custom_call.1} parent=5 // pred_check_branch
        %136 = sbr.rel (%p133) target = $region12
      $region11: #{tpu_custom_call.1} parent=5 // pred_region
        %s137 = ssub.s32 %s15, 1
        // Predicated region
        $region13: #{tpu_custom_call.1} parent=11 // pred_check
          %p138 = pneg %p76
        $region14: #{tpu_custom_call.1} parent=11 // pred_check_branch
          %140 = sbr.rel (%p138) target = $region16
        $region15: #{tpu_custom_call.1} parent=11 // pred_region
          _
        $region16: #{tpu_custom_call.1} parent=11 // pred_fallthru
          _
        // Predicated region
        $region17: #{tpu_custom_call.1} parent=11 // pred_check
          %p141 = pneg %p97
        $region18: #{tpu_custom_call.1} parent=11 // pred_check_branch
          %143 = sbr.rel (%p141) target = $region20
        $region19: #{tpu_custom_call.1} parent=11 // pred_region
          _
        $region20: #{tpu_custom_call.1} parent=11 // pred_fallthru
          _
      $region12: #{tpu_custom_call.1} parent=5 // pred_fallthru
        _
      %p144 = scmp.lt.s32.totalorder %s15, 2
      // Predicated region
      $region21: #{tpu_custom_call.1} parent=5 // pred_check
        %p145 = pneg %p144
      $region22: #{tpu_custom_call.1} parent=5 // pred_check_branch
        %147 = sbr.rel (%p145) target = $region24
      $region23: #{tpu_custom_call.1} parent=5 // pred_region
        // Predicated region
        $region25: #{tpu_custom_call.1} parent=23 // pred_check
          %p148 = pneg %p49
        $region26: #{tpu_custom_call.1} parent=23 // pred_check_branch
          %150 = sbr.rel (%p148) target = $region28
        $region27: #{tpu_custom_call.1} parent=23 // pred_region
          %s151 = sand.u32 %s39, 1
          %s152 = scalar_lea.sflag [#allocation5], %s151
          %s153 = sand.u32 %s39, 1
          %s154 = smul.addr %s153, 64
          %s155 = scalar_lea.vmem [#allocation4], %s154
          %s156 = smul.u32 2, %s23
          %s158 = ssub.s32 1024, 1024
          %159 = vsyncadd %s152, %s158
          %s160 = smul.addr %s22, 8
          %s161 = sadd.s32 %s156, %s160
          %s162 = smul.addr %s161, 128
          %s163 = scalar_lea.hbm %s0, %s162
          %s164 = sshll.u32 %s155, 4
          %s165 = int_to_ptr.vmem [resolvable:$true] %s164
          %170 = dma.hbm_to_vmem [thread:$0]  %s163, 1024, %s165, %s152, 256, 256, 16
        $region28: #{tpu_custom_call.1} parent=23 // pred_fallthru
          _
      $region24: #{tpu_custom_call.1} parent=5 // pred_fallthru
        _
      %p171 = scmp.le.s32.totalorder 1, %s15
      %p172 = scmp.lt.s32.totalorder %s15, 3
      %p173 = pnand %p171, %p172
      %p174 = pneg %p173
      // Predicated region
      $region29: #{tpu_custom_call.1} parent=5 // pred_check
        _
      $region30: #{tpu_custom_call.1} parent=5 // pred_check_branch
        %176 = sbr.rel (%p173) target = $region32
      $region31: #{tpu_custom_call.1} parent=5 // pred_region
        %s177 = ssub.s32 %s15, 1
        %s178 = sand.u32 %s42, 1
        %s179 = scalar_lea.sflag [#allocation5], %s178
        %s180 = sand.u32 %s42, 1
        %s181 = smul.addr %s180, 64
        %s182 = scalar_lea.vmem [#allocation4], %s181
        // Predicated region
        $region33: #{tpu_custom_call.1} parent=31 // pred_check
          %p183 = pneg %p55
        $region34: #{tpu_custom_call.1} parent=31 // pred_check_branch
          %185 = sbr.rel (%p183) target = $region36
        $region35: #{tpu_custom_call.1} parent=31 // pred_region
          %186 = dma.done %s179, 1024
        $region36: #{tpu_custom_call.1} parent=31 // pred_fallthru
          _
        %s187 = sand.u32 %s42, 1
        %s188 = scalar_lea.sflag [#allocation5], %s187
        %s189 = sand.u32 %s42, 1
        %s190 = smul.addr %s189, 64
        %s191 = scalar_lea.vmem [#allocation4], %s190
        %p192 = pneg %p55
        %p193 = pneg %p52
        %p194 = pneg %p76
        %p195 = pneg %p73
        %p196 = pneg %p97
        %p197 = pneg %p94
        %p198 = pneg %p123
        %p199 = pneg %p120
        %s200 = sand.u32 %s110, 1
        %s201 = scalar_lea.sflag [#allocation6], %s200
        %s202 = sand.u32 %s110, 1
        %s203 = scalar_lea.vmem [#allocation7], %s202
        %s204 = smul.u32 2, %s25
        %p205 = scmp.eq.s32.totalorder %s25, 0
        // Predicated region
        $region37: #{tpu_custom_call.1} parent=31 // pred_check
          %p206 = pneg %p205
        $region38: #{tpu_custom_call.1} parent=31 // pred_check_branch
          %208 = sbr.rel (%p206) target = $region40
        $region39: #{tpu_custom_call.1} parent=31 // pred_region
          %vm209 = vcmask 253952
          %210 = vst.msk [vmem:[#allocation2] sm:$0x1] %vm209, 0.0
          %211 = vst.msk [vmem:[#allocation3] sm:$0x1] %vm209, -inf
        $region40: #{tpu_custom_call.1} parent=31 // pred_fallthru
          _
        %v212 = vld [vmem:[%s182] sm:$0xff]
        %v213 = vld [vmem:[%s182 + $0x8] sm:$0xff]
        %v214 = vld [vmem:[%s182 + $0x10] sm:$0xff]
        %v215 = vld [vmem:[%s182 + $0x18] sm:$0xff]
        %v216 = vld [vmem:[%s182 + $0x20] sm:$0xff]
        %v217 = vld [vmem:[%s182 + $0x28] sm:$0xff]
        %v218 = vld [vmem:[%s182 + $0x30] sm:$0xff]
        %v219 = vld [vmem:[%s182 + $0x38] sm:$0xff]
        %v220 = vld [vmem:[#allocation2] sm:$0x1]
        %vm221 = vcmask 670720
        %v222 = vsel %vm221, %v213, 0.0
        %v223 = vadd.f32 %v212, %v222
        %224 = vadd.xlane.f32.xlu0 %v223
        %v225 = vpop.xlane.xlu0 %224
        %v226 = vsel %vm221, %v215, 0.0
        %v227 = vadd.f32 %v214, %v226
        %228 = vadd.xlane.f32.xlu0 %v227
        %v229 = vpop.xlane.xlu0 %228
        %v230 = vsel %vm221, %v217, 0.0
        %v231 = vadd.f32 %v216, %v230
        %232 = vadd.xlane.f32.xlu0 %v231
        %v233 = vpop.xlane.xlu0 %232
        %v234 = vsel %vm221, %v219, 0.0
        %v235 = vadd.f32 %v218, %v234
        %236 = vadd.xlane.f32.xlu0 %v235
        %v237 = vpop.xlane.xlu0 %236
        %v242 = vlaneseq
        %v243 = vshrl.u32 %v242, 7
        %v244 = vsub.s32 0, %v243
        %v245 = vrot.slane %v225, %v244
        %v246 = vlaneseq
        %v247 = vshrl.u32 %v246, 7
        %v248 = vsub.s32 1, %v247
        %v249 = vrot.slane %v225, %v248
        %v250 = vlaneseq
        %v251 = vshrl.u32 %v250, 7
        %v252 = vsub.s32 2, %v251
        %v253 = vrot.slane %v225, %v252
        %v254 = vlaneseq
        %v255 = vshrl.u32 %v254, 7
        %v256 = vsub.s32 3, %v255
        %v257 = vrot.slane %v225, %v256
        %v258 = vlaneseq
        %v259 = vshrl.u32 %v258, 7
        %v260 = vsub.s32 4, %v259
        %v261 = vrot.slane %v225, %v260
        %v262 = vlaneseq
        %v263 = vshrl.u32 %v262, 7
        %v264 = vsub.s32 5, %v263
        %v265 = vrot.slane %v225, %v264
        %v266 = vlaneseq
        %v267 = vshrl.u32 %v266, 7
        %v268 = vsub.s32 6, %v267
        %v269 = vrot.slane %v225, %v268
        %v270 = vlaneseq
        %v271 = vshrl.u32 %v270, 7
        %v272 = vsub.s32 7, %v271
        %v273 = vrot.slane %v225, %v272
        %v274 = vlaneseq
        %v275 = vshrl.u32 %v274, 7
        %v276 = vsub.s32 0, %v275
        %v277 = vrot.slane %v229, %v276
        %v278 = vlaneseq
        %v279 = vshrl.u32 %v278, 7
        %v280 = vsub.s32 1, %v279
        %v281 = vrot.slane %v229, %v280
        %v282 = vlaneseq
        %v283 = vshrl.u32 %v282, 7
        %v284 = vsub.s32 2, %v283
        %v285 = vrot.slane %v229, %v284
        %v286 = vlaneseq
        %v287 = vshrl.u32 %v286, 7
        %v288 = vsub.s32 3, %v287
        %v289 = vrot.slane %v229, %v288
        %v290 = vlaneseq
        %v291 = vshrl.u32 %v290, 7
        %v292 = vsub.s32 4, %v291
        %v293 = vrot.slane %v229, %v292
        %v294 = vlaneseq
        %v295 = vshrl.u32 %v294, 7
        %v296 = vsub.s32 5, %v295
        %v297 = vrot.slane %v229, %v296
        %v298 = vlaneseq
        %v299 = vshrl.u32 %v298, 7
        %v300 = vsub.s32 6, %v299
        %v301 = vrot.slane %v229, %v300
        %v302 = vlaneseq
        %v303 = vshrl.u32 %v302, 7
        %v304 = vsub.s32 7, %v303
        %v305 = vrot.slane %v229, %v304
        %v306 = vlaneseq
        %v307 = vshrl.u32 %v306, 7
        %v308 = vsub.s32 0, %v307
        %v309 = vrot.slane %v233, %v308
        %v310 = vlaneseq
        %v311 = vshrl.u32 %v310, 7
        %v312 = vsub.s32 1, %v311
        %v313 = vrot.slane %v233, %v312
        %v314 = vlaneseq
        %v315 = vshrl.u32 %v314, 7
        %v316 = vsub.s32 2, %v315
        %v317 = vrot.slane %v233, %v316
        %v318 = vlaneseq
        %v319 = vshrl.u32 %v318, 7
        %v320 = vsub.s32 3, %v319
        %v321 = vrot.slane %v233, %v320
        %v322 = vlaneseq
        %v323 = vshrl.u32 %v322, 7
        %v324 = vsub.s32 4, %v323
        %v325 = vrot.slane %v233, %v324
        %v326 = vlaneseq
        %v327 = vshrl.u32 %v326, 7
        %v328 = vsub.s32 5, %v327
        %v329 = vrot.slane %v233, %v328
        %v330 = vlaneseq
        %v331 = vshrl.u32 %v330, 7
        %v332 = vsub.s32 6, %v331
        %v333 = vrot.slane %v233, %v332
        %v334 = vlaneseq
        %v335 = vshrl.u32 %v334, 7
        %v336 = vsub.s32 7, %v335
        %v337 = vrot.slane %v233, %v336
        %v338 = vlaneseq
        %v339 = vshrl.u32 %v338, 7
        %v340 = vsub.s32 0, %v339
        %v341 = vrot.slane %v237, %v340
        %v342 = vlaneseq
        %v343 = vshrl.u32 %v342, 7
        %v344 = vsub.s32 1, %v343
        %v345 = vrot.slane %v237, %v344
        %v346 = vlaneseq
        %v347 = vshrl.u32 %v346, 7
        %v348 = vsub.s32 2, %v347
        %v349 = vrot.slane %v237, %v348
        %v350 = vlaneseq
        %v351 = vshrl.u32 %v350, 7
        %v352 = vsub.s32 3, %v351
        %v353 = vrot.slane %v237, %v352
        %v354 = vlaneseq
        %v355 = vshrl.u32 %v354, 7
        %v356 = vsub.s32 4, %v355
        %v357 = vrot.slane %v237, %v356
        %v358 = vlaneseq
        %v359 = vshrl.u32 %v358, 7
        %v360 = vsub.s32 5, %v359
        %v361 = vrot.slane %v237, %v360
        %v362 = vlaneseq
        %v363 = vshrl.u32 %v362, 7
        %v364 = vsub.s32 6, %v363
        %v365 = vrot.slane %v237, %v364
        %v366 = vlaneseq
        %v367 = vshrl.u32 %v366, 7
        %v368 = vsub.s32 7, %v367
        %v369 = vrot.slane %v237, %v368
        %v370 = vcombine.low %v245, %v249
        %v371 = vcombine.low %v253, %v257
        %v372 = vcombine.low %v261, %v265
        %v373 = vcombine.low %v269, %v273
        %v375 = vunpack.c.l.s4 1966171168
        %v376 = vunpack.c.0.s8 %v375
        %v377 = vlaneseq
        %v378 = vshrl.u32 %v377, 7
        %v379 = vsub.s32 %v376, %v378
        %v380 = vrot.slane %v370, %v379
        %v382 = vunpack.c.l.s4 1966171168
        %v383 = vunpack.c.0.s8 %v382
        %v384 = vlaneseq
        %v385 = vshrl.u32 %v384, 7
        %v386 = vsub.s32 %v383, %v385
        %v387 = vrot.slane %v371, %v386
        %v389 = vunpack.c.l.s4 1966171168
        %v390 = vunpack.c.0.s8 %v389
        %v391 = vlaneseq
        %v392 = vshrl.u32 %v391, 7
        %v393 = vsub.s32 %v390, %v392
        %v394 = vrot.slane %v372, %v393
        %v396 = vunpack.c.l.s4 1966171168
        %v397 = vunpack.c.0.s8 %v396
        %v398 = vlaneseq
        %v399 = vshrl.u32 %v398, 7
        %v400 = vsub.s32 %v397, %v399
        %v401 = vrot.slane %v373, %v400
        %v402 = vcombine.low %v380, %v387
        %v403 = vcombine.low %v394, %v401
        %v405 = vunpack.c.l.s4 1966171168
        %v406 = vunpack.c.0.s8 %v405
        %v407 = vlaneseq
        %v408 = vshrl.u32 %v407, 7
        %v409 = vsub.s32 %v406, %v408
        %v410 = vrot.slane %v402, %v409
        %v412 = vunpack.c.l.s4 1966171168
        %v413 = vunpack.c.0.s8 %v412
        %v414 = vlaneseq
        %v415 = vshrl.u32 %v414, 7
        %v416 = vsub.s32 %v413, %v415
        %v417 = vrot.slane %v403, %v416
        %v418 = vcombine.low %v410, %v417
        %v419 = vcombine.low %v277, %v281
        %v420 = vcombine.low %v285, %v289
        %v421 = vcombine.low %v293, %v297
        %v422 = vcombine.low %v301, %v305
        %v424 = vunpack.c.l.s4 1966171168
        %v425 = vunpack.c.0.s8 %v424
        %v426 = vlaneseq
        %v427 = vshrl.u32 %v426, 7
        %v428 = vsub.s32 %v425, %v427
        %v429 = vrot.slane %v419, %v428
        %v431 = vunpack.c.l.s4 1966171168
        %v432 = vunpack.c.0.s8 %v431
        %v433 = vlaneseq
        %v434 = vshrl.u32 %v433, 7
        %v435 = vsub.s32 %v432, %v434
        %v436 = vrot.slane %v420, %v435
        %v438 = vunpack.c.l.s4 1966171168
        %v439 = vunpack.c.0.s8 %v438
        %v440 = vlaneseq
        %v441 = vshrl.u32 %v440, 7
        %v442 = vsub.s32 %v439, %v441
        %v443 = vrot.slane %v421, %v442
        %v445 = vunpack.c.l.s4 1966171168
        %v446 = vunpack.c.0.s8 %v445
        %v447 = vlaneseq
        %v448 = vshrl.u32 %v447, 7
        %v449 = vsub.s32 %v446, %v448
        %v450 = vrot.slane %v422, %v449
        %v451 = vcombine.low %v429, %v436
        %v452 = vcombine.low %v443, %v450
        %v454 = vunpack.c.l.s4 1966171168
        %v455 = vunpack.c.0.s8 %v454
        %v456 = vlaneseq
        %v457 = vshrl.u32 %v456, 7
        %v458 = vsub.s32 %v455, %v457
        %v459 = vrot.slane %v451, %v458
        %v461 = vunpack.c.l.s4 1966171168
        %v462 = vunpack.c.0.s8 %v461
        %v463 = vlaneseq
        %v464 = vshrl.u32 %v463, 7
        %v465 = vsub.s32 %v462, %v464
        %v466 = vrot.slane %v452, %v465
        %v467 = vcombine.low %v459, %v466
        %v468 = vcombine.low %v309, %v313
        %v469 = vcombine.low %v317, %v321
        %v470 = vcombine.low %v325, %v329
        %v471 = vcombine.low %v333, %v337
        %v473 = vunpack.c.l.s4 1966171168
        %v474 = vunpack.c.0.s8 %v473
        %v475 = vlaneseq
        %v476 = vshrl.u32 %v475, 7
        %v477 = vsub.s32 %v474, %v476
        %v478 = vrot.slane %v468, %v477
        %v480 = vunpack.c.l.s4 1966171168
        %v481 = vunpack.c.0.s8 %v480
        %v482 = vlaneseq
        %v483 = vshrl.u32 %v482, 7
        %v484 = vsub.s32 %v481, %v483
        %v485 = vrot.slane %v469, %v484
        %v487 = vunpack.c.l.s4 1966171168
        %v488 = vunpack.c.0.s8 %v487
        %v489 = vlaneseq
        %v490 = vshrl.u32 %v489, 7
        %v491 = vsub.s32 %v488, %v490
        %v492 = vrot.slane %v470, %v491
        %v494 = vunpack.c.l.s4 1966171168
        %v495 = vunpack.c.0.s8 %v494
        %v496 = vlaneseq
        %v497 = vshrl.u32 %v496, 7
        %v498 = vsub.s32 %v495, %v497
        %v499 = vrot.slane %v471, %v498
        %v500 = vcombine.low %v478, %v485
        %v501 = vcombine.low %v492, %v499
        %v503 = vunpack.c.l.s4 1966171168
        %v504 = vunpack.c.0.s8 %v503
        %v505 = vlaneseq
        %v506 = vshrl.u32 %v505, 7
        %v507 = vsub.s32 %v504, %v506
        %v508 = vrot.slane %v500, %v507
        %v510 = vunpack.c.l.s4 1966171168
        %v511 = vunpack.c.0.s8 %v510
        %v512 = vlaneseq
        %v513 = vshrl.u32 %v512, 7
        %v514 = vsub.s32 %v511, %v513
        %v515 = vrot.slane %v501, %v514
        %v516 = vcombine.low %v508, %v515
        %v517 = vcombine.low %v341, %v345
        %v518 = vcombine.low %v349, %v353
        %v519 = vcombine.low %v357, %v361
        %v520 = vcombine.low %v365, %v369
        %v522 = vunpack.c.l.s4 1966171168
        %v523 = vunpack.c.0.s8 %v522
        %v524 = vlaneseq
        %v525 = vshrl.u32 %v524, 7
        %v526 = vsub.s32 %v523, %v525
        %v527 = vrot.slane %v517, %v526
        %v529 = vunpack.c.l.s4 1966171168
        %v530 = vunpack.c.0.s8 %v529
        %v531 = vlaneseq
        %v532 = vshrl.u32 %v531, 7
        %v533 = vsub.s32 %v530, %v532
        %v534 = vrot.slane %v518, %v533
        %v536 = vunpack.c.l.s4 1966171168
        %v537 = vunpack.c.0.s8 %v536
        %v538 = vlaneseq
        %v539 = vshrl.u32 %v538, 7
        %v540 = vsub.s32 %v537, %v539
        %v541 = vrot.slane %v519, %v540
        %v543 = vunpack.c.l.s4 1966171168
        %v544 = vunpack.c.0.s8 %v543
        %v545 = vlaneseq
        %v546 = vshrl.u32 %v545, 7
        %v547 = vsub.s32 %v544, %v546
        %v548 = vrot.slane %v520, %v547
        %v549 = vcombine.low %v527, %v534
        %v550 = vcombine.low %v541, %v548
        %v552 = vunpack.c.l.s4 1966171168
        %v553 = vunpack.c.0.s8 %v552
        %v554 = vlaneseq
        %v555 = vshrl.u32 %v554, 7
        %v556 = vsub.s32 %v553, %v555
        %v557 = vrot.slane %v549, %v556
        %v559 = vunpack.c.l.s4 1966171168
        %v560 = vunpack.c.0.s8 %v559
        %v561 = vlaneseq
        %v562 = vshrl.u32 %v561, 7
        %v563 = vsub.s32 %v560, %v562
        %v564 = vrot.slane %v550, %v563
        %v565 = vcombine.low %v557, %v564
        %566 = vset.pattern.permute.xlu0 0
        %567 = vperm.xlu0 %566, %v418
        %v568 = vpop.permute.xlu0 %567
        %569 = vset.pattern.permute.xlu0 0
        %570 = vperm.xlu0 %569, %v467
        %v571 = vpop.permute.xlu0 %570
        %572 = vset.pattern.permute.xlu0 0
        %573 = vperm.xlu0 %572, %v516
        %v574 = vpop.permute.xlu0 %573
        %575 = vset.pattern.permute.xlu0 0
        %576 = vperm.xlu0 %575, %v565
        %v577 = vpop.permute.xlu0 %576
        %v578 = vlaneseq
        %v579 = vand.u32 %v578, 127
        %v580 = vlaneseq
        %v581 = vshrl.u32 %v580, 7
        %v582 = vsub.s32 %v579, %v581
        %v583 = vrot.slane %v568, %v582
        %v584 = vadd.s32 %v579, 4294967288
        %v585 = vlaneseq
        %v586 = vshrl.u32 %v585, 7
        %v587 = vsub.s32 %v584, %v586
        %v588 = vrot.slane %v571, %v587
        %vm589 = vcmask 130112
        %v590 = vsel %vm589, %v588, %v583
        %v591 = vadd.s32 %v579, 4294967280
        %v592 = vlaneseq
        %v593 = vshrl.u32 %v592, 7
        %v594 = vsub.s32 %v591, %v593
        %v595 = vrot.slane %v574, %v594
        %vm596 = vcmask 195712
        %v597 = vsel %vm596, %v595, %v590
        %v598 = vadd.s32 %v579, 4294967272
        %v599 = vlaneseq
        %v600 = vshrl.u32 %v599, 7
        %v601 = vsub.s32 %v598, %v600
        %v602 = vrot.slane %v577, %v601
        %vm603 = vcmask 261312
        %v604 = vsel %vm603, %v602, %v597
        %v606 = vunpack.c.l.s4 1966171168
        %v607 = vunpack.c.0.s8 %v606
        %v608 = vlaneseq
        %v609 = vshrl.u32 %v608, 7
        %v610 = vsub.s32 %v607, %v609
        %v611 = vrot.slane %v604, %v610
        %v613 = vunpack.c.l.s4 1966171168
        %v614 = vunpack.c.0.s8 %v613
        %v615 = vlaneseq
        %v616 = vshrl.u32 %v615, 7
        %v617 = vsub.s32 %v614, %v616
        %v618 = vrot.slane %v611, %v617
        %v620 = vadd.f32 %v220, %v618
        %vm621 = vcmask 253952
        %622 = vst.msk [vmem:[#allocation2] sm:$0x1] %vm621, %v620
        %v623 = vld [vmem:[#allocation3] sm:$0x1]
        %v624 = vsel %vm221, %v213, -inf
        %v625 = vmax.f32 %v212, %v624
        %626 = vmax.xlane.f32.xlu0 %v625
        %v627 = vpop.xlane.xlu0 %626
        %v628 = vsel %vm221, %v215, -inf
        %v629 = vmax.f32 %v214, %v628
        %630 = vmax.xlane.f32.xlu0 %v629
        %v631 = vpop.xlane.xlu0 %630
        %v632 = vsel %vm221, %v217, -inf
        %v633 = vmax.f32 %v216, %v632
        %634 = vmax.xlane.f32.xlu0 %v633
        %v635 = vpop.xlane.xlu0 %634
        %v636 = vsel %vm221, %v219, -inf
        %v637 = vmax.f32 %v218, %v636
        %638 = vmax.xlane.f32.xlu0 %v637
        %v639 = vpop.xlane.xlu0 %638
        %v644 = vlaneseq
        %v645 = vshrl.u32 %v644, 7
        %v646 = vsub.s32 0, %v645
        %v647 = vrot.slane %v627, %v646
        %v648 = vlaneseq
        %v649 = vshrl.u32 %v648, 7
        %v650 = vsub.s32 1, %v649
        %v651 = vrot.slane %v627, %v650
        %v652 = vlaneseq
        %v653 = vshrl.u32 %v652, 7
        %v654 = vsub.s32 2, %v653
        %v655 = vrot.slane %v627, %v654
        %v656 = vlaneseq
        %v657 = vshrl.u32 %v656, 7
        %v658 = vsub.s32 3, %v657
        %v659 = vrot.slane %v627, %v658
        %v660 = vlaneseq
        %v661 = vshrl.u32 %v660, 7
        %v662 = vsub.s32 4, %v661
        %v663 = vrot.slane %v627, %v662
        %v664 = vlaneseq
        %v665 = vshrl.u32 %v664, 7
        %v666 = vsub.s32 5, %v665
        %v667 = vrot.slane %v627, %v666
        %v668 = vlaneseq
        %v669 = vshrl.u32 %v668, 7
        %v670 = vsub.s32 6, %v669
        %v671 = vrot.slane %v627, %v670
        %v672 = vlaneseq
        %v673 = vshrl.u32 %v672, 7
        %v674 = vsub.s32 7, %v673
        %v675 = vrot.slane %v627, %v674
        %v676 = vlaneseq
        %v677 = vshrl.u32 %v676, 7
        %v678 = vsub.s32 0, %v677
        %v679 = vrot.slane %v631, %v678
        %v680 = vlaneseq
        %v681 = vshrl.u32 %v680, 7
        %v682 = vsub.s32 1, %v681
        %v683 = vrot.slane %v631, %v682
        %v684 = vlaneseq
        %v685 = vshrl.u32 %v684, 7
        %v686 = vsub.s32 2, %v685
        %v687 = vrot.slane %v631, %v686
        %v688 = vlaneseq
        %v689 = vshrl.u32 %v688, 7
        %v690 = vsub.s32 3, %v689
        %v691 = vrot.slane %v631, %v690
        %v692 = vlaneseq
        %v693 = vshrl.u32 %v692, 7
        %v694 = vsub.s32 4, %v693
        %v695 = vrot.slane %v631, %v694
        %v696 = vlaneseq
        %v697 = vshrl.u32 %v696, 7
        %v698 = vsub.s32 5, %v697
        %v699 = vrot.slane %v631, %v698
        %v700 = vlaneseq
        %v701 = vshrl.u32 %v700, 7
        %v702 = vsub.s32 6, %v701
        %v703 = vrot.slane %v631, %v702
        %v704 = vlaneseq
        %v705 = vshrl.u32 %v704, 7
        %v706 = vsub.s32 7, %v705
        %v707 = vrot.slane %v631, %v706
        %v708 = vlaneseq
        %v709 = vshrl.u32 %v708, 7
        %v710 = vsub.s32 0, %v709
        %v711 = vrot.slane %v635, %v710
        %v712 = vlaneseq
        %v713 = vshrl.u32 %v712, 7
        %v714 = vsub.s32 1, %v713
        %v715 = vrot.slane %v635, %v714
        %v716 = vlaneseq
        %v717 = vshrl.u32 %v716, 7
        %v718 = vsub.s32 2, %v717
        %v719 = vrot.slane %v635, %v718
        %v720 = vlaneseq
        %v721 = vshrl.u32 %v720, 7
        %v722 = vsub.s32 3, %v721
        %v723 = vrot.slane %v635, %v722
        %v724 = vlaneseq
        %v725 = vshrl.u32 %v724, 7
        %v726 = vsub.s32 4, %v725
        %v727 = vrot.slane %v635, %v726
        %v728 = vlaneseq
        %v729 = vshrl.u32 %v728, 7
        %v730 = vsub.s32 5, %v729
        %v731 = vrot.slane %v635, %v730
        %v732 = vlaneseq
        %v733 = vshrl.u32 %v732, 7
        %v734 = vsub.s32 6, %v733
        %v735 = vrot.slane %v635, %v734
        %v736 = vlaneseq
        %v737 = vshrl.u32 %v736, 7
        %v738 = vsub.s32 7, %v737
        %v739 = vrot.slane %v635, %v738
        %v740 = vlaneseq
        %v741 = vshrl.u32 %v740, 7
        %v742 = vsub.s32 0, %v741
        %v743 = vrot.slane %v639, %v742
        %v744 = vlaneseq
        %v745 = vshrl.u32 %v744, 7
        %v746 = vsub.s32 1, %v745
        %v747 = vrot.slane %v639, %v746
        %v748 = vlaneseq
        %v749 = vshrl.u32 %v748, 7
        %v750 = vsub.s32 2, %v749
        %v751 = vrot.slane %v639, %v750
        %v752 = vlaneseq
        %v753 = vshrl.u32 %v752, 7
        %v754 = vsub.s32 3, %v753
        %v755 = vrot.slane %v639, %v754
        %v756 = vlaneseq
        %v757 = vshrl.u32 %v756, 7
        %v758 = vsub.s32 4, %v757
        %v759 = vrot.slane %v639, %v758
        %v760 = vlaneseq
        %v761 = vshrl.u32 %v760, 7
        %v762 = vsub.s32 5, %v761
        %v763 = vrot.slane %v639, %v762
        %v764 = vlaneseq
        %v765 = vshrl.u32 %v764, 7
        %v766 = vsub.s32 6, %v765
        %v767 = vrot.slane %v639, %v766
        %v768 = vlaneseq
        %v769 = vshrl.u32 %v768, 7
        %v770 = vsub.s32 7, %v769
        %v771 = vrot.slane %v639, %v770
        %v772 = vcombine.low %v647, %v651
        %v773 = vcombine.low %v655, %v659
        %v774 = vcombine.low %v663, %v667
        %v775 = vcombine.low %v671, %v675
        %v777 = vunpack.c.l.s4 1966171168
        %v778 = vunpack.c.0.s8 %v777
        %v779 = vlaneseq
        %v780 = vshrl.u32 %v779, 7
        %v781 = vsub.s32 %v778, %v780
        %v782 = vrot.slane %v772, %v781
        %v784 = vunpack.c.l.s4 1966171168
        %v785 = vunpack.c.0.s8 %v784
        %v786 = vlaneseq
        %v787 = vshrl.u32 %v786, 7
        %v788 = vsub.s32 %v785, %v787
        %v789 = vrot.slane %v773, %v788
        %v791 = vunpack.c.l.s4 1966171168
        %v792 = vunpack.c.0.s8 %v791
        %v793 = vlaneseq
        %v794 = vshrl.u32 %v793, 7
        %v795 = vsub.s32 %v792, %v794
        %v796 = vrot.slane %v774, %v795
        %v798 = vunpack.c.l.s4 1966171168
        %v799 = vunpack.c.0.s8 %v798
        %v800 = vlaneseq
        %v801 = vshrl.u32 %v800, 7
        %v802 = vsub.s32 %v799, %v801
        %v803 = vrot.slane %v775, %v802
        %v804 = vcombine.low %v782, %v789
        %v805 = vcombine.low %v796, %v803
        %v807 = vunpack.c.l.s4 1966171168
        %v808 = vunpack.c.0.s8 %v807
        %v809 = vlaneseq
        %v810 = vshrl.u32 %v809, 7
        %v811 = vsub.s32 %v808, %v810
        %v812 = vrot.slane %v804, %v811
        %v814 = vunpack.c.l.s4 1966171168
        %v815 = vunpack.c.0.s8 %v814
        %v816 = vlaneseq
        %v817 = vshrl.u32 %v816, 7
        %v818 = vsub.s32 %v815, %v817
        %v819 = vrot.slane %v805, %v818
        %v820 = vcombine.low %v812, %v819
        %v821 = vcombine.low %v679, %v683
        %v822 = vcombine.low %v687, %v691
        %v823 = vcombine.low %v695, %v699
        %v824 = vcombine.low %v703, %v707
        %v826 = vunpack.c.l.s4 1966171168
        %v827 = vunpack.c.0.s8 %v826
        %v828 = vlaneseq
        %v829 = vshrl.u32 %v828, 7
        %v830 = vsub.s32 %v827, %v829
        %v831 = vrot.slane %v821, %v830
        %v833 = vunpack.c.l.s4 1966171168
        %v834 = vunpack.c.0.s8 %v833
        %v835 = vlaneseq
        %v836 = vshrl.u32 %v835, 7
        %v837 = vsub.s32 %v834, %v836
        %v838 = vrot.slane %v822, %v837
        %v840 = vunpack.c.l.s4 1966171168
        %v841 = vunpack.c.0.s8 %v840
        %v842 = vlaneseq
        %v843 = vshrl.u32 %v842, 7
        %v844 = vsub.s32 %v841, %v843
        %v845 = vrot.slane %v823, %v844
        %v847 = vunpack.c.l.s4 1966171168
        %v848 = vunpack.c.0.s8 %v847
        %v849 = vlaneseq
        %v850 = vshrl.u32 %v849, 7
        %v851 = vsub.s32 %v848, %v850
        %v852 = vrot.slane %v824, %v851
        %v853 = vcombine.low %v831, %v838
        %v854 = vcombine.low %v845, %v852
        %v856 = vunpack.c.l.s4 1966171168
        %v857 = vunpack.c.0.s8 %v856
        %v858 = vlaneseq
        %v859 = vshrl.u32 %v858, 7
        %v860 = vsub.s32 %v857, %v859
        %v861 = vrot.slane %v853, %v860
        %v863 = vunpack.c.l.s4 1966171168
        %v864 = vunpack.c.0.s8 %v863
        %v865 = vlaneseq
        %v866 = vshrl.u32 %v865, 7
        %v867 = vsub.s32 %v864, %v866
        %v868 = vrot.slane %v854, %v867
        %v869 = vcombine.low %v861, %v868
        %v870 = vcombine.low %v711, %v715
        %v871 = vcombine.low %v719, %v723
        %v872 = vcombine.low %v727, %v731
        %v873 = vcombine.low %v735, %v739
        %v875 = vunpack.c.l.s4 1966171168
        %v876 = vunpack.c.0.s8 %v875
        %v877 = vlaneseq
        %v878 = vshrl.u32 %v877, 7
        %v879 = vsub.s32 %v876, %v878
        %v880 = vrot.slane %v870, %v879
        %v882 = vunpack.c.l.s4 1966171168
        %v883 = vunpack.c.0.s8 %v882
        %v884 = vlaneseq
        %v885 = vshrl.u32 %v884, 7
        %v886 = vsub.s32 %v883, %v885
        %v887 = vrot.slane %v871, %v886
        %v889 = vunpack.c.l.s4 1966171168
        %v890 = vunpack.c.0.s8 %v889
        %v891 = vlaneseq
        %v892 = vshrl.u32 %v891, 7
        %v893 = vsub.s32 %v890, %v892
        %v894 = vrot.slane %v872, %v893
        %v896 = vunpack.c.l.s4 1966171168
        %v897 = vunpack.c.0.s8 %v896
        %v898 = vlaneseq
        %v899 = vshrl.u32 %v898, 7
        %v900 = vsub.s32 %v897, %v899
        %v901 = vrot.slane %v873, %v900
        %v902 = vcombine.low %v880, %v887
        %v903 = vcombine.low %v894, %v901
        %v905 = vunpack.c.l.s4 1966171168
        %v906 = vunpack.c.0.s8 %v905
        %v907 = vlaneseq
        %v908 = vshrl.u32 %v907, 7
        %v909 = vsub.s32 %v906, %v908
        %v910 = vrot.slane %v902, %v909
        %v912 = vunpack.c.l.s4 1966171168
        %v913 = vunpack.c.0.s8 %v912
        %v914 = vlaneseq
        %v915 = vshrl.u32 %v914, 7
        %v916 = vsub.s32 %v913, %v915
        %v917 = vrot.slane %v903, %v916
        %v918 = vcombine.low %v910, %v917
        %v919 = vcombine.low %v743, %v747
        %v920 = vcombine.low %v751, %v755
        %v921 = vcombine.low %v759, %v763
        %v922 = vcombine.low %v767, %v771
        %v924 = vunpack.c.l.s4 1966171168
        %v925 = vunpack.c.0.s8 %v924
        %v926 = vlaneseq
        %v927 = vshrl.u32 %v926, 7
        %v928 = vsub.s32 %v925, %v927
        %v929 = vrot.slane %v919, %v928
        %v931 = vunpack.c.l.s4 1966171168
        %v932 = vunpack.c.0.s8 %v931
        %v933 = vlaneseq
        %v934 = vshrl.u32 %v933, 7
        %v935 = vsub.s32 %v932, %v934
        %v936 = vrot.slane %v920, %v935
        %v938 = vunpack.c.l.s4 1966171168
        %v939 = vunpack.c.0.s8 %v938
        %v940 = vlaneseq
        %v941 = vshrl.u32 %v940, 7
        %v942 = vsub.s32 %v939, %v941
        %v943 = vrot.slane %v921, %v942
        %v945 = vunpack.c.l.s4 1966171168
        %v946 = vunpack.c.0.s8 %v945
        %v947 = vlaneseq
        %v948 = vshrl.u32 %v947, 7
        %v949 = vsub.s32 %v946, %v948
        %v950 = vrot.slane %v922, %v949
        %v951 = vcombine.low %v929, %v936
        %v952 = vcombine.low %v943, %v950
        %v954 = vunpack.c.l.s4 1966171168
        %v955 = vunpack.c.0.s8 %v954
        %v956 = vlaneseq
        %v957 = vshrl.u32 %v956, 7
        %v958 = vsub.s32 %v955, %v957
        %v959 = vrot.slane %v951, %v958
        %v961 = vunpack.c.l.s4 1966171168
        %v962 = vunpack.c.0.s8 %v961
        %v963 = vlaneseq
        %v964 = vshrl.u32 %v963, 7
        %v965 = vsub.s32 %v962, %v964
        %v966 = vrot.slane %v952, %v965
        %v967 = vcombine.low %v959, %v966
        %968 = vset.pattern.permute.xlu0 0
        %969 = vperm.xlu0 %968, %v820
        %v970 = vpop.permute.xlu0 %969
        %971 = vset.pattern.permute.xlu0 0
        %972 = vperm.xlu0 %971, %v869
        %v973 = vpop.permute.xlu0 %972
        %974 = vset.pattern.permute.xlu0 0
        %975 = vperm.xlu0 %974, %v918
        %v976 = vpop.permute.xlu0 %975
        %977 = vset.pattern.permute.xlu0 0
        %978 = vperm.xlu0 %977, %v967
        %v979 = vpop.permute.xlu0 %978
        %v980 = vlaneseq
        %v981 = vshrl.u32 %v980, 7
        %v982 = vsub.s32 %v579, %v981
        %v983 = vrot.slane %v970, %v982
        %v984 = vlaneseq
        %v985 = vshrl.u32 %v984, 7
        %v986 = vsub.s32 %v584, %v985
        %v987 = vrot.slane %v973, %v986
        %v988 = vsel %vm589, %v987, %v983
        %v989 = vlaneseq
        %v990 = vshrl.u32 %v989, 7
        %v991 = vsub.s32 %v591, %v990
        %v992 = vrot.slane %v976, %v991
        %v993 = vsel %vm596, %v992, %v988
        %v994 = vlaneseq
        %v995 = vshrl.u32 %v994, 7
        %v996 = vsub.s32 %v598, %v995
        %v997 = vrot.slane %v979, %v996
        %v998 = vsel %vm603, %v997, %v993
        %v1000 = vunpack.c.l.s4 1966171168
        %v1001 = vunpack.c.0.s8 %v1000
        %v1002 = vlaneseq
        %v1003 = vshrl.u32 %v1002, 7
        %v1004 = vsub.s32 %v1001, %v1003
        %v1005 = vrot.slane %v998, %v1004
        %v1007 = vunpack.c.l.s4 1966171168
        %v1008 = vunpack.c.0.s8 %v1007
        %v1009 = vlaneseq
        %v1010 = vshrl.u32 %v1009, 7
        %v1011 = vsub.s32 %v1008, %v1010
        %v1012 = vrot.slane %v1005, %v1011
        %v1014 = vmax.f32 %v623, %v1012
        %1015 = vst.msk [vmem:[#allocation3] sm:$0x1] %vm621, %v1014
        // Predicated region
        $region41: #{tpu_custom_call.1} parent=31 // pred_check
          %p1016 = pneg %p205
        $region42: #{tpu_custom_call.1} parent=31 // pred_check_branch
          %1018 = sbr.rel (%p1016) target = $region44
        $region43: #{tpu_custom_call.1} parent=31 // pred_region
          %v1019 = vld [vmem:[#allocation2] sm:$0x1]
          %v1020 = vmul.f32 %v1019, 0.004761905
          %v1021 = vld [vmem:[#allocation3] sm:$0x1]
          %v1023 = vlaneseq
          %v1024 = vshrl.u32 %v1023, 7
          %v1025 = vsub.s32 0, %v1024
          %v1026 = vrot.slane %v1021, %v1025
          %vm1028 = vcmask 1040384
          %v1029 = vsel %vm1028, %v1020, %v1026
          %v1030 = vld [vmem:[%s1] sm:$0xff]
          %v1031 = vld [vmem:[%s1 + $0x8] sm:$0xff]
          %v1032 = vld [vmem:[%s1 + $0x10] sm:$0xff]
          %v1033 = vld [vmem:[%s1 + $0x18] sm:$0xff]
          %vm1034 = vcmask 261120
          %v1036 = vsel %vm1034, %v1029, 0
          %1038 = vmatprep.subr.mxu0 0.0
          %1039 = vmatpush1.msra.mxu0 %v1030
          %1040 = vmatprep.subr.mxu0 0.0
          %1041 = vmatpush1.msra.mxu0 %v1031
          %1042 = vmatprep.subr.mxu0 0.0
          %1043 = vmatpush1.msra.mxu0 %v1032
          %1044 = vmatprep.subr.mxu0 0.0
          %1045 = vmatpush1.msra.mxu0 %v1033
          %1046 = vmatprep.subr.mxu0 0.0
          %1047 = vmatpush1.msra.mxu0 0.0
          %1048 = vmatprep.subr.mxu0 0.0
          %1049 = vmatpush1.msra.mxu0 0.0
          %1050 = vmatprep.subr.mxu0 0.0
          %1051 = vmatpush1.msra.mxu0 0.0
          %1052 = vmatprep.subr.mxu0 0.0
          %1053 = vmatpush1.msra.mxu0 0.0
          %1054 = vmatprep.subr.mxu0 0.0
          %1055 = vmatpush1.msra.mxu0 0.0
          %1056 = vmatprep.subr.mxu0 0.0
          %1057 = vmatpush1.msra.mxu0 0.0
          %1058 = vmatprep.subr.mxu0 0.0
          %1059 = vmatpush1.msra.mxu0 0.0
          %1060 = vmatprep.subr.mxu0 0.0
          %1061 = vmatpush1.msra.mxu0 0.0
          %1062 = vmatprep.subr.mxu0 0.0
          %1063 = vmatpush1.msra.mxu0 0.0
          %1064 = vmatprep.subr.mxu0 0.0
          %1065 = vmatpush1.msra.mxu0 0.0
          %1066 = vmatprep.subr.mxu0 0.0
          %1067 = vmatpush1.msra.mxu0 0.0
          %1068 = vmatprep.subr.mxu0 0.0
          %1069 = vmatpush1.msra.mxu0 0.0
          %1070 = vmatprep.subr.mxu0 0.0
          %1071 = vmatpush1.msra.mxu0 0.0
          %1072 = vmatprep.subr.mxu0 0.0
          %1073 = vmatpush1.msra.mxu0 0.0
          %1074 = vmatprep.subr.mxu0 0.0
          %1075 = vmatpush1.msra.mxu0 0.0
          %1076 = vmatprep.subr.mxu0 0.0
          %1077 = vmatpush1.msra.mxu0 0.0
          %1078 = vmatprep.subr.mxu0 0.0
          %1079 = vmatpush1.msra.mxu0 0.0
          %1080 = vmatprep.subr.mxu0 0.0
          %1081 = vmatpush1.msra.mxu0 0.0
          %1082 = vmatprep.subr.mxu0 0.0
          %1083 = vmatpush1.msra.mxu0 0.0
          %1084 = vmatprep.subr.mxu0 0.0
          %1085 = vmatpush1.msra.mxu0 0.0
          %1086 = vmatprep.subr.mxu0 0.0
          %1087 = vmatpush1.msra.mxu0 0.0
          %1088 = vmatprep.subr.mxu0 0.0
          %1089 = vmatpush1.msra.mxu0 0.0
          %1090 = vmatprep.subr.mxu0 0.0
          %1091 = vmatpush1.msra.mxu0 0.0
          %1092 = vmatprep.subr.mxu0 0.0
          %1093 = vmatpush1.msra.mxu0 0.0
          %1094 = vmatprep.subr.mxu0 0.0
          %1095 = vmatpush1.msra.mxu0 0.0
          %1096 = vmatprep.subr.mxu0 0.0
          %1097 = vmatpush1.msra.mxu0 0.0
          %1098 = vmatprep.subr.mxu0 0.0
          %1099 = vmatpush1.msra.mxu0 0.0
          %1100 = vmatprep.subr.mxu0 0.0
          %1101 = vmatpush1.msra.mxu0 0.0
          %1102 = vmatprep.mubr.f32.mxu0 0.0
          %1103 = vmatmul.mubr.f32.gmra.mrb[0].mxu0 %v1036
          %v1104 = vpop.f32.mrb[0].mxu0
          %v1105 = vadd.f32 0.0, %v1104
          %v1106 = vpop.f32.mrb[0].mxu0
          %1107 = vdwg.mxu0
          %vm1108 = vcmp.ge.f32.partialorder %v1105, 0.0
          %v1109 = vmul.f32 %v1105, 0.1
          %v1110 = vsel %vm1108, %v1105, %v1109
          %v1111 = vld [vmem:[%s2] sm:$0x3]
          %vm1112 = vcmask 15360
          %v1114 = vsel %vm1112, %v1110, 0
          %vm1116 = vcmask 1041408
          %v1118 = vsel %vm1116, %v1111, 0
          %1120 = vmatprep.subr.mxu0 0.0
          %1121 = vmatpush1.msra.mxu0 %v1118
          %1122 = vmatprep.subr.mxu0 0.0
          %1123 = vmatpush1.msra.mxu0 0.0
          %1124 = vmatprep.subr.mxu0 0.0
          %1125 = vmatpush1.msra.mxu0 0.0
          %1126 = vmatprep.subr.mxu0 0.0
          %1127 = vmatpush1.msra.mxu0 0.0
          %1128 = vmatprep.subr.mxu0 0.0
          %1129 = vmatpush1.msra.mxu0 0.0
          %1130 = vmatprep.subr.mxu0 0.0
          %1131 = vmatpush1.msra.mxu0 0.0
          %1132 = vmatprep.subr.mxu0 0.0
          %1133 = vmatpush1.msra.mxu0 0.0
          %1134 = vmatprep.subr.mxu0 0.0
          %1135 = vmatpush1.msra.mxu0 0.0
          %1136 = vmatprep.subr.mxu0 0.0
          %1137 = vmatpush1.msra.mxu0 0.0
          %1138 = vmatprep.subr.mxu0 0.0
          %1139 = vmatpush1.msra.mxu0 0.0
          %1140 = vmatprep.subr.mxu0 0.0
          %1141 = vmatpush1.msra.mxu0 0.0
          %1142 = vmatprep.subr.mxu0 0.0
          %1143 = vmatpush1.msra.mxu0 0.0
          %1144 = vmatprep.subr.mxu0 0.0
          %1145 = vmatpush1.msra.mxu0 0.0
          %1146 = vmatprep.subr.mxu0 0.0
          %1147 = vmatpush1.msra.mxu0 0.0
          %1148 = vmatprep.subr.mxu0 0.0
          %1149 = vmatpush1.msra.mxu0 0.0
          %1150 = vmatprep.subr.mxu0 0.0
          %1151 = vmatpush1.msra.mxu0 0.0
          %1152 = vmatprep.subr.mxu0 0.0
          %1153 = vmatpush1.msra.mxu0 0.0
          %1154 = vmatprep.subr.mxu0 0.0
          %1155 = vmatpush1.msra.mxu0 0.0
          %1156 = vmatprep.subr.mxu0 0.0
          %1157 = vmatpush1.msra.mxu0 0.0
          %1158 = vmatprep.subr.mxu0 0.0
          %1159 = vmatpush1.msra.mxu0 0.0
          %1160 = vmatprep.subr.mxu0 0.0
          %1161 = vmatpush1.msra.mxu0 0.0
          %1162 = vmatprep.subr.mxu0 0.0
          %1163 = vmatpush1.msra.mxu0 0.0
          %1164 = vmatprep.subr.mxu0 0.0
          %1165 = vmatpush1.msra.mxu0 0.0
          %1166 = vmatprep.subr.mxu0 0.0
          %1167 = vmatpush1.msra.mxu0 0.0
          %1168 = vmatprep.subr.mxu0 0.0
          %1169 = vmatpush1.msra.mxu0 0.0
          %1170 = vmatprep.subr.mxu0 0.0
          %1171 = vmatpush1.msra.mxu0 0.0
          %1172 = vmatprep.subr.mxu0 0.0
          %1173 = vmatpush1.msra.mxu0 0.0
          %1174 = vmatprep.subr.mxu0 0.0
          %1175 = vmatpush1.msra.mxu0 0.0
          %1176 = vmatprep.subr.mxu0 0.0
          %1177 = vmatpush1.msra.mxu0 0.0
          %1178 = vmatprep.subr.mxu0 0.0
          %1179 = vmatpush1.msra.mxu0 0.0
          %1180 = vmatprep.subr.mxu0 0.0
          %1181 = vmatpush1.msra.mxu0 0.0
          %1182 = vmatprep.subr.mxu0 0.0
          %1183 = vmatpush1.msra.mxu0 0.0
          %1184 = vmatprep.mubr.f32.mxu0 0.0
          %1185 = vmatmul.mubr.f32.gmra.mrb[0].mxu0 %v1114
          %v1186 = vpop.f32.mrb[0].mxu0
          %v1187 = vadd.f32 0.0, %v1186
          %v1188 = vpop.f32.mrb[0].mxu0
          %1189 = vdwg.mxu0
          %v1191 = vrot.slane %v1187, 1
          %v1193 = vadd.f32 %v1187, %v1191
          %v1194 = vxor.u32 %v1193, 2147483648
          %v1195 = vmul.f32 %v1194, 1.442695
          %v1196 = vpow.pop %v1195
          %v1197 = vadd.f32 %v1196, 1.0
          %v1198 = vrcp.pop %v1197
          %v1199 = vmul.f32 1.0, %v1198
          %1200 = vst.msk [vmem:[%s203] sm:$0x1] %vm621, %v1199
        $region44: #{tpu_custom_call.1} parent=31 // pred_fallthru
          _
        %s1201 = sand.u32 %s110, 1
        %s1202 = scalar_lea.sflag [#allocation6], %s1201
        %s1203 = sand.u32 %s110, 1
        %s1204 = scalar_lea.vmem [#allocation7], %s1203
        // Predicated region
        $region45: #{tpu_custom_call.1} parent=31 // pred_check
          %p1205 = pneg %p120
        $region46: #{tpu_custom_call.1} parent=31 // pred_check_branch
          %1207 = sbr.rel (%p1205) target = $region48
        $region47: #{tpu_custom_call.1} parent=31 // pred_region
          %s1209 = ssub.s32 16, 16
          %1210 = vsyncadd %s1202, %s1209
          %s1211 = smul.addr %s24, 16
          %s1212 = scalar_lea.hbm %s3, %s1211
          %s1214 = sshll.u32 %s1204, 4
          %s1215 = int_to_ptr.vmem [resolvable:$true] %s1214
          %1217 = dma.vmem_to_hbm [thread:$0]  %s1215, 16, %s1212, %s1202
        $region48: #{tpu_custom_call.1} parent=31 // pred_fallthru
          _
      $region32: #{tpu_custom_call.1} parent=5 // pred_fallthru
        _
      %p1218 = scmp.le.s32.totalorder 2, %s15
      // Predicated region
      $region49: #{tpu_custom_call.1} parent=5 // pred_check
        %p1219 = pneg %p1218
      $region50: #{tpu_custom_call.1} parent=5 // pred_check_branch
        %1221 = sbr.rel (%p1219) target = $region52
      $region51: #{tpu_custom_call.1} parent=5 // pred_region
        %s1222 = ssub.s32 %s15, 2
        // Predicated region
        $region53: #{tpu_custom_call.1} parent=51 // pred_check
          %p1223 = pneg %p126
        $region54: #{tpu_custom_call.1} parent=51 // pred_check_branch
          %1225 = sbr.rel (%p1223) target = $region56
        $region55: #{tpu_custom_call.1} parent=51 // pred_region
          %s1226 = sand.u32 %s111, 1
          %s1227 = scalar_lea.sflag [#allocation6], %s1226
          %s1228 = sand.u32 %s111, 1
          %s1229 = scalar_lea.vmem [#allocation7], %s1228
          %1230 = dma.done %s1227, 16
        $region56: #{tpu_custom_call.1} parent=51 // pred_fallthru
          _
      $region52: #{tpu_custom_call.1} parent=5 // pred_fallthru
        _
    $region6: #{tpu_custom_call.1} parent=1 // loop_footer
      %s19 = sadd.s32 1, %s15
    $region7: #{tpu_custom_call.1} parent=1 // loop_footer_branch
      %14 = sbr.rel target = $region3
    $region8: #{tpu_custom_call.1} parent=1 // loop_exit
      _
    %1231 = vsyncpa [#allocation5], 1
    %s1232 = scalar_lea.sflag [#allocation5], 1
    %1233 = vsyncpa %s1232, 1
    %1234 = vsyncpa [#allocation6], 1
    %s1235 = scalar_lea.sflag [#allocation6], 1
    %1236 = vsyncpa %s1235, 1

</llo_original>
